<compile_context>
chip_gen: v5e
topology: v5e:2x2
jax: 0.10.0
libtpu: 0.0.40
codegen_flags: <defaults>
</compile_context>

<pallas_src>
import functools

import jax
import jax.numpy as jnp
from jax.experimental import pallas as pl
from jax.experimental.pallas import tpu as pltpu


def _four_pneumonia_kernel(x_ref, w1_ref, b1_ref, w2_ref, b2_ref, o_ref,
                           feats_acc, *, hw_total, thw, needs_mask):
    # x_ref:      [tb, C, thw]  native dtype (lane-dense HW tile straight from HBM)
    # feats_acc:  [tb, C] f32 VMEM scratch, persists across the HW reduction axis.
    hw_i = pl.program_id(1)

    @pl.when(hw_i == 0)
    def _():
        feats_acc[...] = jnp.zeros_like(feats_acc)

    x = x_ref[...]
    if needs_mask:
        # Only the last HW tile is ragged; out-of-range lanes (undefined pad data)
        # are zeroed so they do not perturb the GAP sum.  Pure VPU work -> free
        # filler under the HBM-bound x read.
        lane = jax.lax.broadcasted_iota(jnp.int32, x.shape, dimension=2)
        x = jnp.where(hw_i * thw + lane < hw_total, x, jnp.zeros_like(x))

    # Accumulate the partial GAP sum in f32 without materializing an f32 tile copy.
    feats_acc[...] += jnp.sum(x, axis=-1, dtype=jnp.float32)

    @pl.when(hw_i == pl.num_programs(1) - 1)
    def _():
        # Mean over the *true* HW (masked lanes contributed exactly zero).
        feats = feats_acc[...] * (1.0 / hw_total)
        # Dropout(p=0.2) in eval mode == identity.
        h = jnp.dot(feats, w1_ref[...], preferred_element_type=jnp.float32)
        h = jnp.maximum(h + b1_ref[...], 0.0)
        # Dropout(p=0.2) in eval mode == identity.
        o = jnp.dot(h, w2_ref[...], preferred_element_type=jnp.float32) + b2_ref[...]
        o_ref[...] = o.astype(o_ref.dtype)


def four_pneumonia_forward(x_nchw, w1, b1, w2, b2, *,
                           max_block_bytes=8 * 1024 * 1024, thw=None, tb=None):
    B, C, H, W = x_nchw.shape
    HW = H * W
    hidden = w1.shape[1]
    out_dim = w2.shape[1]
    itemsize = jnp.dtype(x_nchw.dtype).itemsize

    # ---------------- tile sizing (thw first, then tb) ----------------
    hw_pad = pl.cdiv(HW, 128) * 128
    # Smallest batch tile we would ever use (multiple of 8, or the full batch).
    tb_floor = 8 if (B % 8 == 0 and B >= 8) else B
    if thw is None:
        thw = (max_block_bytes // (tb_floor * C * itemsize)) // 128 * 128
        thw = max(128, min(thw, hw_pad))
    grid_hw = pl.cdiv(HW, thw)
    needs_mask = (HW % thw) != 0

    if tb is None:
        tb_budget = max(1, max_block_bytes // (C * thw * itemsize))
        # grid_b >= 2 when possible so the PARALLEL batch axis shards across both
        # v7x TensorCores (each TC has its own HBM path).
        cap = min(tb_budget, max(1, B // 2))
        cands = [d for d in range(8, B + 1, 8) if B % d == 0 and d <= cap]
        if cands:
            tb = max(cands)
        elif B % 8 == 0:
            tb = 8
        else:
            # Output block sublane dim must be a multiple of 8 or the full dim.
            tb = B
    grid_b = pl.cdiv(B, tb)

    # ---------------- wrapper data path (no copies of x) ----------------
    # Trailing-dim merge is a metadata-only reshape (bitcast under jit): no HBM pass,
    # no dtype change, no pad of the big activation tensor.
    x3 = x_nchw.reshape(B, C, HW)

    # Lane-dense output: pad the *tiny* head weights to 128 columns so the final
    # store is an unmasked vst; the wrapper slices the 4 real logits back out.
    out_pad = 128
    w2p = jnp.zeros((hidden, out_pad), w2.dtype).at[:, :out_dim].set(w2)
    b2p = jnp.zeros((1, out_pad), b2.dtype).at[0, :out_dim].set(b2)
    b1r = b1.reshape(1, hidden)

    kernel = functools.partial(_four_pneumonia_kernel, hw_total=HW, thw=thw,
                               needs_mask=needs_mask)

    x_block_bytes = tb * C * thw * itemsize
    # 2x (double-buffered x) + weights/bias/scratch/output headroom; 32 MiB covers the
    # default-sized config on every generation (v5e default is only 16 MiB scoped).
    vmem_limit = int(max(32 * 1024 * 1024, 2 * x_block_bytes + (4 << 20)))

    out = pl.pallas_call(
        kernel,
        out_shape=jax.ShapeDtypeStruct((B, out_pad), jnp.float32),
        grid_spec=pltpu.PrefetchScalarGridSpec(
            num_scalar_prefetch=0,
            grid=(grid_b, grid_hw),
            in_specs=[
                pl.BlockSpec((tb, C, thw), lambda b, h: (b, 0, h)),
                pl.BlockSpec((C, hidden), lambda b, h: (0, 0)),
                pl.BlockSpec((1, hidden), lambda b, h: (0, 0)),
                pl.BlockSpec((hidden, out_pad), lambda b, h: (0, 0)),
                pl.BlockSpec((1, out_pad), lambda b, h: (0, 0)),
            ],
            out_specs=pl.BlockSpec((tb, out_pad), lambda b, h: (b, 0)),
            scratch_shapes=[pltpu.VMEM((tb, C), jnp.float32)],
        ),
        compiler_params=pltpu.CompilerParams(
            dimension_semantics=(pltpu.PARALLEL, pltpu.ARBITRARY),
            vmem_limit_bytes=vmem_limit,
        ),
    )(x3, w1, b1r, w2p, b2p)
    return out[:, :out_dim]


def init_params(key, input_features, hidden=128, out_dim=4):
    # PyTorch-style Linear init: U(-1/sqrt(fan_in), 1/sqrt(fan_in)), deterministic.
    k1, k2, k3, k4 = jax.random.split(key, 4)
    bound1 = 1.0 / jnp.sqrt(jnp.float32(input_features))
    w1 = jax.random.uniform(k1, (input_features, hidden), jnp.float32, -bound1, bound1)
    b1 = jax.random.uniform(k2, (hidden,), jnp.float32, -bound1, bound1)
    bound2 = 1.0 / jnp.sqrt(jnp.float32(hidden))
    w2 = jax.random.uniform(k3, (hidden, out_dim), jnp.float32, -bound2, bound2)
    b2 = jax.random.uniform(k4, (out_dim,), jnp.float32, -bound2, bound2)
    return w1, b1, w2, b2


if __name__ == "__main__":
    key = jax.random.PRNGKey(0)
    kx, kp, kx2 = jax.random.split(key, 3)

    # Small shapes consistent with the module: batch=2, input_features=32 channels,
    # spatial 16x16 (the base_model stand-in GAPs the spatial dims away).
    B, C, H, W = 2, 32, 16, 16
    x = jax.random.normal(kx, (B, C, H, W), dtype=jnp.float32)
    w1, b1, w2, b2 = init_params(kp, input_features=C, hidden=128, out_dim=4)

    def reference(xin):
        feats = jnp.mean(xin.reshape(xin.shape[0], xin.shape[1], -1), axis=2)
        return jnp.maximum(feats @ w1 + b1, 0.0) @ w2 + b2

    # thw=128 at this toy size forces two HW reduction steps, exercising the
    # accumulate-then-finalize path (the auto-sizer would use one big tile).
    fwd = jax.jit(functools.partial(four_pneumonia_forward, thw=128))

    # Case 1: HW divisible by the tile (no mask path).
    out = jax.block_until_ready(fwd(x, w1, b1, w2, b2))
    ref = reference(x)
    assert out.shape == (B, 4)
    assert jnp.allclose(out, ref, atol=1e-3, rtol=1e-3)

    # Case 2: ragged HW (16x10 = 160), exercising the in-kernel mask on the last tile.
    x2 = jax.random.normal(kx2, (B, C, 16, 10), dtype=jnp.float32)
    out2 = jax.block_until_ready(fwd(x2, w1, b1, w2, b2))
    ref2 = reference(x2)
    assert out2.shape == (B, 4)
    assert jnp.allclose(out2, ref2, atol=1e-3, rtol=1e-3)

    print("KERNEL_OK")
</pallas_src>

<mosaic_0001>
module attributes {stable_mosaic.version = 11 : i64} {
  func.func @_four_pneumonia_kernel(%arg0: i32, %arg1: i32, %arg2: memref<2x32x128xf32, #tpu.memory_space<vmem>>, %arg3: memref<32x128xf32, #tpu.memory_space<vmem>>, %arg4: memref<1x128xf32, #tpu.memory_space<vmem>>, %arg5: memref<128x128xf32, #tpu.memory_space<vmem>>, %arg6: memref<1x128xf32, #tpu.memory_space<vmem>>, %arg7: memref<2x128xf32, #tpu.memory_space<vmem>>, %arg8: memref<2x32xf32, #tpu.memory_space<vmem>>) attributes {dimension_semantics = [#tpu.dimension_semantics<parallel>, #tpu.dimension_semantics<arbitrary>], iteration_bounds = array<i64: 1, 2>, scalar_prefetch = 0 : i64, scratch_operands = 1 : i64, tpu.core_type = #tpu.core_type<tc>, window_params = [{transform_indices = @transform_0, window_bounds = array<i64: 2, 32, 128>}, {pipeline_mode = #tpu.pipeline_mode<synchronous>, transform_indices = @transform_1, window_bounds = array<i64: 32, 128>}, {pipeline_mode = #tpu.pipeline_mode<synchronous>, transform_indices = @transform_2, window_bounds = array<i64: 1, 128>}, {pipeline_mode = #tpu.pipeline_mode<synchronous>, transform_indices = @transform_3, window_bounds = array<i64: 128, 128>}, {pipeline_mode = #tpu.pipeline_mode<synchronous>, transform_indices = @transform_4, window_bounds = array<i64: 1, 128>}, {transform_indices = @transform_5, window_bounds = array<i64: 2, 128>}]} {
    %c0_i32 = arith.constant 0 : i32
    %0 = arith.cmpi eq, %arg1, %c0_i32 : i32
    %1 = arith.extui %0 : i1 to i32
    %c0_i32_0 = arith.constant 0 : i32
    %2 = arith.cmpi ne, %1, %c0_i32_0 : i32
    scf.if %2 {
      %cst_8 = arith.constant 0.000000e+00 : f32
      %11 = vector.broadcast %cst_8 : f32 to vector<2x32xf32>
      %c0_9 = arith.constant 0 : index
      %c0_10 = arith.constant 0 : index
      %12 = vector.load %arg8[%c0_9, %c0_10] : memref<2x32xf32, #tpu.memory_space<vmem>>, vector<2x32xf32>
      tpu.vector_store %arg8[%c0_9, %c0_10], %11 {strides = array<i32>} : memref<2x32xf32, #tpu.memory_space<vmem>>, vector<2x32xf32>,
    } else {
    }
    %c0 = arith.constant 0 : index
    %c0_1 = arith.constant 0 : index
    %c0_2 = arith.constant 0 : index
    %3 = vector.load %arg2[%c0, %c0_1, %c0_2] : memref<2x32x128xf32, #tpu.memory_space<vmem>>, vector<2x32x128xf32>
    %c0_3 = arith.constant 0 : index
    %c0_4 = arith.constant 0 : index
    %4 = vector.load %arg8[%c0_3, %c0_4] : memref<2x32xf32, #tpu.memory_space<vmem>>, vector<2x32xf32>
    %cst = arith.constant dense<0.000000e+00> : vector<2x32xf32>
    %5 = vector.multi_reduction <add>, %3, %cst [2] : vector<2x32x128xf32> to vector<2x32xf32>
    %6 = arith.addf %4, %5 : vector<2x32xf32>
    %c0_5 = arith.constant 0 : index
    %c0_6 = arith.constant 0 : index
    %7 = vector.load %arg8[%c0_5, %c0_6] : memref<2x32xf32, #tpu.memory_space<vmem>>, vector<2x32xf32>
    tpu.vector_store %arg8[%c0_5, %c0_6], %6 {strides = array<i32>} : memref<2x32xf32, #tpu.memory_space<vmem>>, vector<2x32xf32>,
    %c1_i32 = arith.constant 1 : i32
    %8 = arith.cmpi eq, %arg1, %c1_i32 : i32
    %9 = arith.extui %8 : i1 to i32
    %c0_i32_7 = arith.constant 0 : i32
    %10 = arith.cmpi ne, %9, %c0_i32_7 : i32
    scf.if %10 {
      %c0_8 = arith.constant 0 : index
      %c0_9 = arith.constant 0 : index
      %11 = vector.load %arg8[%c0_8, %c0_9] : memref<2x32xf32, #tpu.memory_space<vmem>>, vector<2x32xf32>
      %cst_10 = arith.constant 3.906250e-03 : f32
      %12 = vector.broadcast %cst_10 : f32 to vector<2x32xf32>
      %13 = arith.mulf %11, %12 : vector<2x32xf32>
      %c0_11 = arith.constant 0 : index
      %c0_12 = arith.constant 0 : index
      %14 = vector.load %arg3[%c0_11, %c0_12] : memref<32x128xf32, #tpu.memory_space<vmem>>, vector<32x128xf32>
      %cst_13 = arith.constant dense<0.000000e+00> : vector<2x128xf32>
      %15 = tpu.matmul %13, %14, %cst_13 {dimension_numbers = #tpu.dot_dimension_numbers<[1], [0], [0], [1], [0, 0, 1, 1], [], []>} : vector<2x32xf32>, vector<32x128xf32>, vector<2x128xf32> -> vector<2x128xf32>
      %c0_14 = arith.constant 0 : index
      %c0_15 = arith.constant 0 : index
      %16 = vector.load %arg4[%c0_14, %c0_15] : memref<1x128xf32, #tpu.memory_space<vmem>>, vector<1x128xf32>
      %17 = vector.broadcast %16 : vector<1x128xf32> to vector<2x128xf32>
      %18 = arith.addf %15, %17 : vector<2x128xf32>
      %cst_16 = arith.constant 0.000000e+00 : f32
      %19 = vector.broadcast %cst_16 : f32 to vector<2x128xf32>
      %20 = arith.maximumf %18, %19 : vector<2x128xf32>
      %c0_17 = arith.constant 0 : index
      %c0_18 = arith.constant 0 : index
      %21 = vector.load %arg5[%c0_17, %c0_18] : memref<128x128xf32, #tpu.memory_space<vmem>>, vector<128x128xf32>
      %cst_19 = arith.constant dense<0.000000e+00> : vector<2x128xf32>
      %22 = tpu.matmul %20, %21, %cst_19 {dimension_numbers = #tpu.dot_dimension_numbers<[1], [0], [0], [1], [0, 0, 1, 1], [], []>} : vector<2x128xf32>, vector<128x128xf32>, vector<2x128xf32> -> vector<2x128xf32>
      %c0_20 = arith.constant 0 : index
      %c0_21 = arith.constant 0 : index
      %23 = vector.load %arg6[%c0_20, %c0_21] : memref<1x128xf32, #tpu.memory_space<vmem>>, vector<1x128xf32>
      %24 = vector.broadcast %23 : vector<1x128xf32> to vector<2x128xf32>
      %25 = arith.addf %22, %24 : vector<2x128xf32>
      %c0_22 = arith.constant 0 : index
      %c0_23 = arith.constant 0 : index
      %26 = vector.load %arg7[%c0_22, %c0_23] : memref<2x128xf32, #tpu.memory_space<vmem>>, vector<2x128xf32>
      tpu.vector_store %arg7[%c0_22, %c0_23], %25 {strides = array<i32>} : memref<2x128xf32, #tpu.memory_space<vmem>>, vector<2x128xf32>,
    } else {
    }
    return
  }
  func.func @transform_0(%arg0: i32, %arg1: i32) -> (i32, i32, i32) {
    %c0_i32 = arith.constant 0 : i32
    %c0_i32_0 = arith.constant 0 : i32
    return %arg0, %c0_i32, %arg1 : i32, i32, i32
  }
  func.func @transform_1(%arg0: i32, %arg1: i32) -> (i32, i32) {
    %c0_i32 = arith.constant 0 : i32
    %c0_i32_0 = arith.constant 0 : i32
    %c0_i32_1 = arith.constant 0 : i32
    return %c0_i32, %c0_i32_0 : i32, i32
  }
  func.func @transform_2(%arg0: i32, %arg1: i32) -> (i32, i32) {
    %c0_i32 = arith.constant 0 : i32
    %c0_i32_0 = arith.constant 0 : i32
    %c0_i32_1 = arith.constant 0 : i32
    return %c0_i32, %c0_i32_0 : i32, i32
  }
  func.func @transform_3(%arg0: i32, %arg1: i32) -> (i32, i32) {
    %c0_i32 = arith.constant 0 : i32
    %c0_i32_0 = arith.constant 0 : i32
    %c0_i32_1 = arith.constant 0 : i32
    return %c0_i32, %c0_i32_0 : i32, i32
  }
  func.func @transform_4(%arg0: i32, %arg1: i32) -> (i32, i32) {
    %c0_i32 = arith.constant 0 : i32
    %c0_i32_0 = arith.constant 0 : i32
    %c0_i32_1 = arith.constant 0 : i32
    return %c0_i32, %c0_i32_0 : i32, i32
  }
  func.func @transform_5(%arg0: i32, %arg1: i32) -> (i32, i32) {
    %c0_i32 = arith.constant 0 : i32
    %c0_i32_0 = arith.constant 0 : i32
    return %arg0, %c0_i32 : i32, i32
  }
}

</mosaic_0001>

<llo_original>
// kernel: four_pneumonia_forward.1
$region0: #{four_pneumonia_forward.1}
  #allocation0 [shape = 'u32[]', space=smem, size = 0x4, offset = 0x4, fixed_abs, tag = 'smem constant byte address 0x4 - core index']
  #allocation1 [shape = 'u32[72,128]{1,0:T(1,128)}', space=vmem, size = 0x9000, scoped, tag = 'internal scratch']
  #allocation2 [shape = 'f32[2,32]{1,0:T(2,128)}', space=vmem, size = 0x400, scoped, tag = 'scratch operand']
  %s0 = inlined_call_operand.vmem [shape: f32[2,32,256], index: 0, kind: input, shape index: {}]
  %s1 = inlined_call_operand.vmem [shape: f32[32,128], index: 1, kind: input, shape index: {}]
  %s2 = inlined_call_operand.vmem [shape: f32[1,128], index: 2, kind: input, shape index: {}]
  %s3 = inlined_call_operand.vmem [shape: f32[128,128], index: 3, kind: input, shape index: {}]
  %s4 = inlined_call_operand.vmem [shape: f32[1,128], index: 4, kind: input, shape index: {}]
  %s5 = inlined_call_operand.hbm [shape: f32[2,128], index: 5, kind: output, shape index: {}]
  %s6 = sld [smem:[#allocation0]]
  $region99: #{four_pneumonia_forward.1} parent=0
    _
  %s8 = ssub.s32 1, %s6
  %s9 = scalar_select 0, %s8, %s6
  $region1: #{four_pneumonia_forward.1} parent=0
    #allocation3 [shape = 'u8[65536]{0}', space=vmem, size = 0x10000, scoped, tag = 'input window, operand 0']
    #allocation4 [shape = 'u8[1024]{0}', space=vmem, size = 0x400, scoped, tag = 'output window, operand 0, single buffered']
    #allocation5 [shape = 's32[2]{0}', space=sflag, size = 0x8, scoped, tag = 'scoped memory for four_pneumonia_forward.1']
    %10 = vsyncpa [#allocation5], 0
    loop: start=0, step=1, limit=4
    $region2: #{four_pneumonia_forward.1} parent=1 // loop_pre_header
      _
    $region3: #{four_pneumonia_forward.1} parent=1 // loop_header
      %s12 = sphi 0, %s16
      %p13 = scmp.ge.s32.totalorder %s12, 4
      %s19 = sphi 0, %s31
      %s20 = sphi 0, %s27
      %s21 = sphi 0, %s19
      %s22 = sphi 0, %s20
      %s23 = sphi 0, %s21
      %s24 = sphi 0, %s22
      %s36 = sphi 0, %s38
      %s39 = sphi 0, %s36
      %s40 = sphi 0, %s39
      %s56 = sphi 0, %s40
      %s60 = sphi 0, %s60
      %s62 = sphi 0, %s60
      %s63 = sphi 0, %s62
      %s77 = sphi 0, %s63
      %s81 = sphi 0, %s81
      %s83 = sphi 0, %s81
      %s84 = sphi 0, %s83
      %s98 = sphi 0, %s84
      %s102 = sphi 0, %s102
      %s104 = sphi 0, %s102
      %s105 = sphi 0, %s104
      %s119 = sphi 0, %s105
      %s123 = sphi 0, %s123
      %s125 = sphi 0, %s123
      %s126 = sphi 0, %s125
      %s140 = sphi 0, %s126
      %s146 = sphi 0, %s148
      %s149 = sphi 0, %s146
      %s150 = sphi 0, %s149
      %s166 = sphi 0, %s150
    $region4: #{four_pneumonia_forward.1} parent=1 // loop_header_branch
      %15 = sbr.rel (%p13) target = $region8
    $region5: #{four_pneumonia_forward.1} parent=1 // loop_body
      %s17 = ssub.s32 %s12, 1
      %s18 = ssub.s32 %s12, 2
      %s25 = sadd.s32 1, %s20
      %p26 = scmp.ge.s32.totalorder %s25, 2
      %s27 = scalar_select %p26, 0, %s25
      %s28 = sadd.s32 1, %s19
      %s29 = scalar_select %p26, %s28, %s19
      %p30 = scmp.ge.s32.totalorder %s29, 1
      %s31 = scalar_select %p30, 0, %s29
      %s32 = ssub.s32 %s19, %s31
      %s33 = ssub.s32 %s20, %s27
      %s34 = sor.u32 %s32, %s33
      %p35 = scmp.eq.s32.totalorder %s34, 0
      %s37 = sadd.s32 %s36, 1
      %s38 = scalar_select %p35, %s36, %s37
      %p41 = pneg %p35
      %p42 = scmp.eq.s32.totalorder %s12, 1
      %p43 = por %p41, %p42
      %p44 = scmp.ne.s32.totalorder %s36, %s39
      %p45 = scmp.eq.s32.totalorder %s12, 0
      %p46 = por %p44, %p45
      %p47 = scmp.ne.s32.totalorder %s36, %s39
      %p48 = scmp.eq.s32.totalorder %s17, 1
      %p49 = por %p47, %p48
      %p50 = scmp.ne.s32.totalorder %s39, %s40
      %p51 = scmp.eq.s32.totalorder %s17, 0
      %p52 = por %p50, %p51
      %p53 = scmp.ne.s32.totalorder %s39, %s40
      %p54 = scmp.eq.s32.totalorder %s18, 1
      %p55 = por %p53, %p54
      %p57 = scmp.ne.s32.totalorder %s40, %s56
      %p58 = scmp.eq.s32.totalorder %s18, 0
      %p59 = por %p57, %p58
      %s61 = sadd.s32 %s60, 1
      %p64 = scmp.eq.s32.totalorder %s12, 1
      %p65 = scmp.ne.s32.totalorder %s60, %s62
      %p66 = scmp.eq.s32.totalorder %s12, 0
      %p67 = por %p65, %p66
      %p68 = scmp.ne.s32.totalorder %s60, %s62
      %p69 = scmp.eq.s32.totalorder %s17, 1
      %p70 = por %p68, %p69
      %p71 = scmp.ne.s32.totalorder %s62, %s63
      %p72 = scmp.eq.s32.totalorder %s17, 0
      %p73 = por %p71, %p72
      %p74 = scmp.ne.s32.totalorder %s62, %s63
      %p75 = scmp.eq.s32.totalorder %s18, 1
      %p76 = por %p74, %p75
      %p78 = scmp.ne.s32.totalorder %s63, %s77
      %p79 = scmp.eq.s32.totalorder %s18, 0
      %p80 = por %p78, %p79
      %s82 = sadd.s32 %s81, 1
      %p85 = scmp.eq.s32.totalorder %s12, 1
      %p86 = scmp.ne.s32.totalorder %s81, %s83
      %p87 = scmp.eq.s32.totalorder %s12, 0
      %p88 = por %p86, %p87
      %p89 = scmp.ne.s32.totalorder %s81, %s83
      %p90 = scmp.eq.s32.totalorder %s17, 1
      %p91 = por %p89, %p90
      %p92 = scmp.ne.s32.totalorder %s83, %s84
      %p93 = scmp.eq.s32.totalorder %s17, 0
      %p94 = por %p92, %p93
      %p95 = scmp.ne.s32.totalorder %s83, %s84
      %p96 = scmp.eq.s32.totalorder %s18, 1
      %p97 = por %p95, %p96
      %p99 = scmp.ne.s32.totalorder %s84, %s98
      %p100 = scmp.eq.s32.totalorder %s18, 0
      %p101 = por %p99, %p100
      %s103 = sadd.s32 %s102, 1
      %p106 = scmp.eq.s32.totalorder %s12, 1
      %p107 = scmp.ne.s32.totalorder %s102, %s104
      %p108 = scmp.eq.s32.totalorder %s12, 0
      %p109 = por %p107, %p108
      %p110 = scmp.ne.s32.totalorder %s102, %s104
      %p111 = scmp.eq.s32.totalorder %s17, 1
      %p112 = por %p110, %p111
      %p113 = scmp.ne.s32.totalorder %s104, %s105
      %p114 = scmp.eq.s32.totalorder %s17, 0
      %p115 = por %p113, %p114
      %p116 = scmp.ne.s32.totalorder %s104, %s105
      %p117 = scmp.eq.s32.totalorder %s18, 1
      %p118 = por %p116, %p117
      %p120 = scmp.ne.s32.totalorder %s105, %s119
      %p121 = scmp.eq.s32.totalorder %s18, 0
      %p122 = por %p120, %p121
      %s124 = sadd.s32 %s123, 1
      %p127 = scmp.eq.s32.totalorder %s12, 1
      %p128 = scmp.ne.s32.totalorder %s123, %s125
      %p129 = scmp.eq.s32.totalorder %s12, 0
      %p130 = por %p128, %p129
      %p131 = scmp.ne.s32.totalorder %s123, %s125
      %p132 = scmp.eq.s32.totalorder %s17, 1
      %p133 = por %p131, %p132
      %p134 = scmp.ne.s32.totalorder %s125, %s126
      %p135 = scmp.eq.s32.totalorder %s17, 0
      %p136 = por %p134, %p135
      %p137 = scmp.ne.s32.totalorder %s125, %s126
      %p138 = scmp.eq.s32.totalorder %s18, 1
      %p139 = por %p137, %p138
      %p141 = scmp.ne.s32.totalorder %s126, %s140
      %p142 = scmp.eq.s32.totalorder %s18, 0
      %p143 = por %p141, %p142
      %s144 = ssub.s32 %s19, %s31
      %p145 = scmp.eq.s32.totalorder %s144, 0
      %s147 = sadd.s32 %s146, 1
      %s148 = scalar_select %p145, %s146, %s147
      %p151 = pneg %p145
      %p152 = scmp.eq.s32.totalorder %s12, 1
      %p153 = por %p151, %p152
      %p154 = scmp.ne.s32.totalorder %s146, %s149
      %p155 = scmp.eq.s32.totalorder %s12, 0
      %p156 = por %p154, %p155
      %p157 = scmp.ne.s32.totalorder %s146, %s149
      %p158 = scmp.eq.s32.totalorder %s17, 1
      %p159 = por %p157, %p158
      %p160 = scmp.ne.s32.totalorder %s149, %s150
      %p161 = scmp.eq.s32.totalorder %s17, 0
      %p162 = por %p160, %p161
      %p163 = scmp.ne.s32.totalorder %s149, %s150
      %p164 = scmp.eq.s32.totalorder %s18, 1
      %p165 = por %p163, %p164
      %p167 = scmp.ne.s32.totalorder %s150, %s166
      %p168 = scmp.eq.s32.totalorder %s18, 0
      %p169 = por %p167, %p168
      %p170 = scmp.le.s32.totalorder 1, %s12
      %p171 = scmp.lt.s32.totalorder %s12, 3
      %p172 = pnand %p170, %p171
      %p173 = pneg %p172
      // Predicated region
      $region9: #{four_pneumonia_forward.1} parent=5 // pred_check
        _
      $region10: #{four_pneumonia_forward.1} parent=5 // pred_check_branch
        %175 = sbr.rel (%p172) target = $region12
      $region11: #{four_pneumonia_forward.1} parent=5 // pred_region
        %s176 = ssub.s32 %s12, 1
        // Predicated region
        $region13: #{four_pneumonia_forward.1} parent=11 // pred_check
          %p177 = pneg %p73
        $region14: #{four_pneumonia_forward.1} parent=11 // pred_check_branch
          %179 = sbr.rel (%p177) target = $region16
        $region15: #{four_pneumonia_forward.1} parent=11 // pred_region
          _
        $region16: #{four_pneumonia_forward.1} parent=11 // pred_fallthru
          _
        // Predicated region
        $region17: #{four_pneumonia_forward.1} parent=11 // pred_check
          %p180 = pneg %p94
        $region18: #{four_pneumonia_forward.1} parent=11 // pred_check_branch
          %182 = sbr.rel (%p180) target = $region20
        $region19: #{four_pneumonia_forward.1} parent=11 // pred_region
          _
        $region20: #{four_pneumonia_forward.1} parent=11 // pred_fallthru
          _
        // Predicated region
        $region21: #{four_pneumonia_forward.1} parent=11 // pred_check
          %p183 = pneg %p115
        $region22: #{four_pneumonia_forward.1} parent=11 // pred_check_branch
          %185 = sbr.rel (%p183) target = $region24
        $region23: #{four_pneumonia_forward.1} parent=11 // pred_region
          _
        $region24: #{four_pneumonia_forward.1} parent=11 // pred_fallthru
          _
        // Predicated region
        $region25: #{four_pneumonia_forward.1} parent=11 // pred_check
          %p186 = pneg %p136
        $region26: #{four_pneumonia_forward.1} parent=11 // pred_check_branch
          %188 = sbr.rel (%p186) target = $region28
        $region27: #{four_pneumonia_forward.1} parent=11 // pred_region
          _
        $region28: #{four_pneumonia_forward.1} parent=11 // pred_fallthru
          _
      $region12: #{four_pneumonia_forward.1} parent=5 // pred_fallthru
        _
      %p189 = scmp.lt.s32.totalorder %s12, 2
      // Predicated region
      $region29: #{four_pneumonia_forward.1} parent=5 // pred_check
        %p190 = pneg %p189
      $region30: #{four_pneumonia_forward.1} parent=5 // pred_check_branch
        %192 = sbr.rel (%p190) target = $region32
      $region31: #{four_pneumonia_forward.1} parent=5 // pred_region
        // Predicated region
        $region33: #{four_pneumonia_forward.1} parent=31 // pred_check
          %p193 = pneg %p46
        $region34: #{four_pneumonia_forward.1} parent=31 // pred_check_branch
          %195 = sbr.rel (%p193) target = $region36
        $region35: #{four_pneumonia_forward.1} parent=31 // pred_region
          %s196 = sand.u32 %s36, 1
          %s197 = sand.u32 %s36, 1
          %s198 = smul.addr %s197, 64
          %s199 = scalar_lea.vmem [#allocation3], %s198
          %s200 = smul.u32 2, %s19
          %s201 = smul.addr %s200, 8
          %s202 = sadd.s32 %s20, %s201
          %s203 = smul.addr %s202, 8
          %s204 = scalar_lea.vmem %s0, %s203
          // Predicated region
          $region37: #{four_pneumonia_forward.1} parent=35 // pred_check
            _
          $region38: #{four_pneumonia_forward.1} parent=35 // pred_check_branch
            %206 = sbr.rel (0) target = $region40
          $region39: #{four_pneumonia_forward.1} parent=35 // pred_region
            // Predicated region
            $region41: #{four_pneumonia_forward.1} parent=39 // pred_check
              _
            $region42: #{four_pneumonia_forward.1} parent=39 // pred_check_branch
              %208 = sbr.rel (0) target = $region44
            $region43: #{four_pneumonia_forward.1} parent=39 // pred_region
              // Predicated region
              $region56: #{four_pneumonia_forward.1} parent=43 // pred_check
                _
              $region57: #{four_pneumonia_forward.1} parent=43 // pred_check_branch
                %238 = sbr.rel (0) target = $region59
              $region58: #{four_pneumonia_forward.1} parent=43 // pred_region
                loop: start=0, step=1, limit=1
                $region60: #{four_pneumonia_forward.1} parent=58 // loop_pre_header
                  _
                $region61: #{four_pneumonia_forward.1} parent=58 // loop_header
                  %s240 = sphi 0, %s244
                  %p241 = scmp.ge.s32.totalorder %s240, 1
                  %s245 = sphi %s204, %s204
                  %s246 = sphi %s199, %s199
                $region62: #{four_pneumonia_forward.1} parent=58 // loop_header_branch
                  %243 = sbr.rel (%p241) target = $region66
                $region63: #{four_pneumonia_forward.1} parent=58 // loop_body
                  %v247 = vld [vmem:[%s245] sm:$0xff]
                  %248 = vst [vmem:[%s246] sm:$0xff] %v247
                  %v249 = vld [vmem:[%s245 + $0x10] sm:$0xff]
                  %250 = vst [vmem:[%s246 + $0x8] sm:$0xff] %v249
                  %v251 = vld [vmem:[%s245 + $0x20] sm:$0xff]
                  %252 = vst [vmem:[%s246 + $0x10] sm:$0xff] %v251
                  %v253 = vld [vmem:[%s245 + $0x30] sm:$0xff]
                  %254 = vst [vmem:[%s246 + $0x18] sm:$0xff] %v253
                  %v255 = vld [vmem:[%s245 + $0x40] sm:$0xff]
                  %256 = vst [vmem:[%s246 + $0x20] sm:$0xff] %v255
                  %v257 = vld [vmem:[%s245 + $0x50] sm:$0xff]
                  %258 = vst [vmem:[%s246 + $0x28] sm:$0xff] %v257
                  %v259 = vld [vmem:[%s245 + $0x60] sm:$0xff]
                  %260 = vst [vmem:[%s246 + $0x30] sm:$0xff] %v259
                  %v261 = vld [vmem:[%s245 + $0x70] sm:$0xff]
                  %262 = vst [vmem:[%s246 + $0x38] sm:$0xff] %v261
                $region64: #{four_pneumonia_forward.1} parent=58 // loop_footer
                  %s244 = sadd.s32 1, %s240
                $region65: #{four_pneumonia_forward.1} parent=58 // loop_footer_branch
                  %239 = sbr.rel target = $region61
                $region66: #{four_pneumonia_forward.1} parent=58 // loop_exit
                  _
              $region59: #{four_pneumonia_forward.1} parent=43 // pred_fallthru
                _
              // Predicated region
              $region67: #{four_pneumonia_forward.1} parent=43 // pred_check
                _
              $region68: #{four_pneumonia_forward.1} parent=43 // pred_check_branch
                %264 = sbr.rel target = $region70
              $region69: #{four_pneumonia_forward.1} parent=43 // pred_region
                _
              $region70: #{four_pneumonia_forward.1} parent=43 // pred_fallthru
                _
            $region44: #{four_pneumonia_forward.1} parent=39 // pred_fallthru
              _
            // Predicated region
            $region45: #{four_pneumonia_forward.1} parent=39 // pred_check
              _
            $region46: #{four_pneumonia_forward.1} parent=39 // pred_check_branch
              %210 = sbr.rel target = $region48
            $region47: #{four_pneumonia_forward.1} parent=39 // pred_region
              %s212 = ssub.s32 256, 1
              loop: start=0, step=1, limit=1
              $region49: #{four_pneumonia_forward.1} parent=47 // loop_pre_header
                _
              $region50: #{four_pneumonia_forward.1} parent=47 // loop_header
                %s214 = sphi 0, %s218
                %p215 = scmp.ge.s32.totalorder %s214, 1
                %s219 = sphi %s204, %s204
                %s220 = sphi %s199, %s199
              $region51: #{four_pneumonia_forward.1} parent=47 // loop_header_branch
                %217 = sbr.rel (%p215) target = $region55
              $region52: #{four_pneumonia_forward.1} parent=47 // loop_body
                %v221 = vld [vmem:[%s219] sm:%s212]
                %222 = vst [vmem:[%s220] sm:%s212] %v221
                %v223 = vld [vmem:[%s219 + $0x10] sm:%s212]
                %224 = vst [vmem:[%s220 + $0x8] sm:%s212] %v223
                %v225 = vld [vmem:[%s219 + $0x20] sm:%s212]
                %226 = vst [vmem:[%s220 + $0x10] sm:%s212] %v225
                %v227 = vld [vmem:[%s219 + $0x30] sm:%s212]
                %228 = vst [vmem:[%s220 + $0x18] sm:%s212] %v227
                %v229 = vld [vmem:[%s219 + $0x40] sm:%s212]
                %230 = vst [vmem:[%s220 + $0x20] sm:%s212] %v229
                %v231 = vld [vmem:[%s219 + $0x50] sm:%s212]
                %232 = vst [vmem:[%s220 + $0x28] sm:%s212] %v231
                %v233 = vld [vmem:[%s219 + $0x60] sm:%s212]
                %234 = vst [vmem:[%s220 + $0x30] sm:%s212] %v233
                %v235 = vld [vmem:[%s219 + $0x70] sm:%s212]
                %236 = vst [vmem:[%s220 + $0x38] sm:%s212] %v235
              $region53: #{four_pneumonia_forward.1} parent=47 // loop_footer
                %s218 = sadd.s32 1, %s214
              $region54: #{four_pneumonia_forward.1} parent=47 // loop_footer_branch
                %213 = sbr.rel target = $region50
              $region55: #{four_pneumonia_forward.1} parent=47 // loop_exit
                _
            $region48: #{four_pneumonia_forward.1} parent=39 // pred_fallthru
              _
          $region40: #{four_pneumonia_forward.1} parent=35 // pred_fallthru
            _
          %265 = vnop
        $region36: #{four_pneumonia_forward.1} parent=31 // pred_fallthru
          _
      $region32: #{four_pneumonia_forward.1} parent=5 // pred_fallthru
        _
      %p266 = scmp.le.s32.totalorder 1, %s12
      %p267 = scmp.lt.s32.totalorder %s12, 3
      %p268 = pnand %p266, %p267
      %p269 = pneg %p268
      // Predicated region
      $region71: #{four_pneumonia_forward.1} parent=5 // pred_check
        _
      $region72: #{four_pneumonia_forward.1} parent=5 // pred_check_branch
        %271 = sbr.rel (%p268) target = $region74
      $region73: #{four_pneumonia_forward.1} parent=5 // pred_region
        %s272 = ssub.s32 %s12, 1
        %s273 = sand.u32 %s39, 1
        %s274 = sand.u32 %s39, 1
        %s275 = smul.addr %s274, 64
        %s276 = scalar_lea.vmem [#allocation3], %s275
        // Predicated region
        $region75: #{four_pneumonia_forward.1} parent=73 // pred_check
          %p277 = pneg %p52
        $region76: #{four_pneumonia_forward.1} parent=73 // pred_check_branch
          %279 = sbr.rel (%p277) target = $region78
        $region77: #{four_pneumonia_forward.1} parent=73 // pred_region
          _
        $region78: #{four_pneumonia_forward.1} parent=73 // pred_fallthru
          _
        %s280 = sand.u32 %s39, 1
        %s281 = sand.u32 %s39, 1
        %s282 = smul.addr %s281, 64
        %s283 = scalar_lea.vmem [#allocation3], %s282
        %p284 = pneg %p52
        %p285 = pneg %p49
        %p286 = pneg %p73
        %p287 = pneg %p70
        %p288 = pneg %p94
        %p289 = pneg %p91
        %p290 = pneg %p115
        %p291 = pneg %p112
        %p292 = pneg %p136
        %p293 = pneg %p133
        %p294 = pneg %p162
        %p295 = pneg %p159
        %s296 = smul.u32 2, %s21
        %p297 = scmp.eq.s32.totalorder %s22, 0
        // Predicated region
        $region79: #{four_pneumonia_forward.1} parent=73 // pred_check
          %p298 = pneg %p297
        $region80: #{four_pneumonia_forward.1} parent=73 // pred_check_branch
          %300 = sbr.rel (%p298) target = $region82
        $region81: #{four_pneumonia_forward.1} parent=73 // pred_region
          %vm301 = vcmask 254976
          %302 = vst.msk [vmem:[#allocation2] sm:$0x3] %vm301, 0.0
        $region82: #{four_pneumonia_forward.1} parent=73 // pred_fallthru
          _
        %v303 = vld [vmem:[%s276] sm:$0xff]
        %v304 = vld [vmem:[%s276 + $0x8] sm:$0xff]
        %v305 = vld [vmem:[%s276 + $0x10] sm:$0xff]
        %v306 = vld [vmem:[%s276 + $0x18] sm:$0xff]
        %v307 = vld [vmem:[%s276 + $0x20] sm:$0xff]
        %v308 = vld [vmem:[%s276 + $0x28] sm:$0xff]
        %v309 = vld [vmem:[%s276 + $0x30] sm:$0xff]
        %v310 = vld [vmem:[%s276 + $0x38] sm:$0xff]
        %v311 = vld [vmem:[#allocation2] sm:$0x3]
        %312 = vadd.xlane.f32.xlu0 %v303
        %v313 = vpop.xlane.xlu0 %312
        %314 = vadd.xlane.f32.xlu0 %v304
        %v315 = vpop.xlane.xlu0 %314
        %316 = vadd.xlane.f32.xlu0 %v305
        %v317 = vpop.xlane.xlu0 %316
        %318 = vadd.xlane.f32.xlu0 %v306
        %v319 = vpop.xlane.xlu0 %318
        %320 = vadd.xlane.f32.xlu0 %v307
        %v321 = vpop.xlane.xlu0 %320
        %322 = vadd.xlane.f32.xlu0 %v308
        %v323 = vpop.xlane.xlu0 %322
        %324 = vadd.xlane.f32.xlu0 %v309
        %v325 = vpop.xlane.xlu0 %324
        %326 = vadd.xlane.f32.xlu0 %v310
        %v327 = vpop.xlane.xlu0 %326
        %v336 = vlaneseq
        %v337 = vand.u32 %v336, 127
        %v338 = vperm.slane %v313, %v337
        %v339 = vadd.s32 %v337, 4294967288
        %v340 = vperm.slane %v315, %v339
        %vm341 = vcmask 130112
        %v342 = vsel %vm341, %v340, %v338
        %v343 = vadd.s32 %v337, 4294967280
        %v344 = vperm.slane %v317, %v343
        %vm345 = vcmask 195712
        %v346 = vsel %vm345, %v344, %v342
        %v347 = vadd.s32 %v337, 4294967272
        %v348 = vperm.slane %v319, %v347
        %vm349 = vcmask 261312
        %v350 = vsel %vm349, %v348, %v346
        %v351 = vperm.slane %v321, %v337
        %v352 = vperm.slane %v323, %v339
        %v353 = vsel %vm341, %v352, %v351
        %v354 = vperm.slane %v325, %v343
        %v355 = vsel %vm345, %v354, %v353
        %v356 = vperm.slane %v327, %v347
        %v357 = vsel %vm349, %v356, %v355
        %vm358 = vcmask 1041409
        %v359 = vsel %vm358, %v357, %v350
        %v361 = vadd.f32 %v311, %v359
        %vm362 = vcmask 254976
        %363 = vst.msk [vmem:[#allocation2] sm:$0x3] %vm362, %v361
        %p364 = scmp.eq.s32.totalorder %s22, 1
        // Predicated region
        $region83: #{four_pneumonia_forward.1} parent=73 // pred_check
          %p365 = pneg %p364
        $region84: #{four_pneumonia_forward.1} parent=73 // pred_check_branch
          %367 = sbr.rel (%p365) target = $region86
        $region85: #{four_pneumonia_forward.1} parent=73 // pred_region
          %v368 = vld [vmem:[#allocation2] sm:$0x3]
          %v369 = vmul.f32 %v368, 0.00390625
          %v370 = vld [vmem:[%s1] sm:$0xff]
          %v371 = vld [vmem:[%s1 + $0x8] sm:$0xff]
          %v372 = vld [vmem:[%s1 + $0x10] sm:$0xff]
          %v373 = vld [vmem:[%s1 + $0x18] sm:$0xff]
          %v374 = vld [vmem:[%s2] sm:$0x1]
          %v376 = vperm.slane %v374, 0
          %vm378 = vcmask 261120
          %v380 = vsel %vm378, %v369, 0
          %382 = vmatpush.msra.mxu0 0.0
          %383 = vmatpush.msra.mxu0 0.0
          %384 = vmatpush.msra.mxu0 0.0
          %385 = vmatpush.msra.mxu0 0.0
          %386 = vmatpush.msra.mxu0 0.0
          %387 = vmatpush.msra.mxu0 0.0
          %388 = vmatpush.msra.mxu0 0.0
          %389 = vmatpush.msra.mxu0 0.0
          %390 = vmatpush.msra.mxu0 0.0
          %391 = vmatpush.msra.mxu0 0.0
          %392 = vmatpush.msra.mxu0 0.0
          %393 = vmatpush.msra.mxu0 0.0
          %394 = vmatpush.msra.mxu0 %v373
          %395 = vmatpush.msra.mxu0 %v372
          %396 = vmatpush.msra.mxu0 %v371
          %397 = vmatpush.msra.mxu0 %v370
          %398 = vmatmul.f32.gmra.mxu0 %v380
          %v399 = vpop.f32.mrf.mxu0
          %v400 = vadd.f32 %v376, %v399
          %401 = vdwg.mxu0
          %v402 = vmax.f32 %v400, 0.0
          %v403 = vld [vmem:[%s3] sm:$0xff]
          %v404 = vld [vmem:[%s3 + $0x8] sm:$0xff]
          %v405 = vld [vmem:[%s3 + $0x10] sm:$0xff]
          %v406 = vld [vmem:[%s3 + $0x18] sm:$0xff]
          %v407 = vld [vmem:[%s3 + $0x20] sm:$0xff]
          %v408 = vld [vmem:[%s3 + $0x28] sm:$0xff]
          %v409 = vld [vmem:[%s3 + $0x30] sm:$0xff]
          %v410 = vld [vmem:[%s3 + $0x38] sm:$0xff]
          %v411 = vld [vmem:[%s3 + $0x40] sm:$0xff]
          %v412 = vld [vmem:[%s3 + $0x48] sm:$0xff]
          %v413 = vld [vmem:[%s3 + $0x50] sm:$0xff]
          %v414 = vld [vmem:[%s3 + $0x58] sm:$0xff]
          %v415 = vld [vmem:[%s3 + $0x60] sm:$0xff]
          %v416 = vld [vmem:[%s3 + $0x68] sm:$0xff]
          %v417 = vld [vmem:[%s3 + $0x70] sm:$0xff]
          %v418 = vld [vmem:[%s3 + $0x78] sm:$0xff]
          %v419 = vld [vmem:[%s4] sm:$0x1]
          %v421 = vperm.slane %v419, 0
          %423 = vmatpush.msra.mxu0 %v418
          %424 = vmatpush.msra.mxu0 %v417
          %425 = vmatpush.msra.mxu0 %v416
          %426 = vmatpush.msra.mxu0 %v415
          %427 = vmatpush.msra.mxu0 %v414
          %428 = vmatpush.msra.mxu0 %v413
          %429 = vmatpush.msra.mxu0 %v412
          %430 = vmatpush.msra.mxu0 %v411
          %431 = vmatpush.msra.mxu0 %v410
          %432 = vmatpush.msra.mxu0 %v409
          %433 = vmatpush.msra.mxu0 %v408
          %434 = vmatpush.msra.mxu0 %v407
          %435 = vmatpush.msra.mxu0 %v406
          %436 = vmatpush.msra.mxu0 %v405
          %437 = vmatpush.msra.mxu0 %v404
          %438 = vmatpush.msra.mxu0 %v403
          %439 = vmatmul.f32.gmra.mxu0 %v402
          %v440 = vpop.f32.mrf.mxu0
          %v441 = vadd.f32 %v421, %v440
          %442 = vdwg.mxu0
          %443 = vst [vmem:[#allocation4] sm:$0x3] %v441
        $region86: #{four_pneumonia_forward.1} parent=73 // pred_fallthru
          _
        // Predicated region
        $region87: #{four_pneumonia_forward.1} parent=73 // pred_check
          %p444 = pneg %p159
        $region88: #{four_pneumonia_forward.1} parent=73 // pred_check_branch
          %446 = sbr.rel (%p444) target = $region90
        $region89: #{four_pneumonia_forward.1} parent=73 // pred_region
          %448 = vsyncadd [#allocation5], 0
          %s449 = smul.addr %s21, 2
          %s450 = scalar_lea.hbm %s5, %s449
          %s452 = sshll.u32 [#allocation4], 4
          %s453 = int_to_ptr.vmem [resolvable:$true] %s452
          %s454 = sshll.u32 %s450, 4
          %s455 = int_to_ptr.hbm [resolvable:$true] %s454
          %457 = dma.vmem_to_hbm [thread:$0]  %s453, 32, %s455, [#allocation5]
        $region90: #{four_pneumonia_forward.1} parent=73 // pred_fallthru
          _
        // Predicated region
        $region91: #{four_pneumonia_forward.1} parent=73 // pred_check
          %p458 = pneg %p159
        $region92: #{four_pneumonia_forward.1} parent=73 // pred_check_branch
          %460 = sbr.rel (%p458) target = $region94
        $region93: #{four_pneumonia_forward.1} parent=73 // pred_region
          %462 = dma.done [#allocation5], 32
        $region94: #{four_pneumonia_forward.1} parent=73 // pred_fallthru
          _
      $region74: #{four_pneumonia_forward.1} parent=5 // pred_fallthru
        _
      %p463 = scmp.le.s32.totalorder 2, %s12
      // Predicated region
      $region95: #{four_pneumonia_forward.1} parent=5 // pred_check
        %p464 = pneg %p463
      $region96: #{four_pneumonia_forward.1} parent=5 // pred_check_branch
        %466 = sbr.rel (%p464) target = $region98
      $region97: #{four_pneumonia_forward.1} parent=5 // pred_region
        %s467 = ssub.s32 %s12, 2
      $region98: #{four_pneumonia_forward.1} parent=5 // pred_fallthru
        _
    $region6: #{four_pneumonia_forward.1} parent=1 // loop_footer
      %s16 = sadd.s32 1, %s12
    $region7: #{four_pneumonia_forward.1} parent=1 // loop_footer_branch
      %11 = sbr.rel target = $region3
    $region8: #{four_pneumonia_forward.1} parent=1 // loop_exit
      _
    %468 = vsyncpa [#allocation5], 1
    %s469 = scalar_lea.sflag [#allocation5], 1
    %470 = vsyncpa %s469, 1

</llo_original>
